<compile_context>
chip_gen: v5e
topology: v5e:2x2
jax: 0.10.0
libtpu: 0.0.40
codegen_flags: <defaults>
</compile_context>

<pallas_src>
import jax
import jax.numpy as jnp
from jax.experimental import pallas as pl
from jax.experimental.pallas import tpu as pltpu


def _make_critic_kernel(reduce_output: bool):
    """Build the fused MLP kernel.

    Ref shapes (feature-major, batch on the lane axis):
      xT_ref : (input_size, B_tile)
      wN_ref : (out_features, in_features)   -- PyTorch layout
      bN_ref : (out_features, 1)
      w4_ref : (hidden, 1) if reduce_output else (out_size, hidden)
      o_ref  : (out_size, B_tile)            -- lane-dense output
    """

    def kernel(xT_ref, w1_ref, b1_ref, w2_ref, b2_ref,
               w3_ref, b3_ref, w4_ref, b4_ref, o_ref):
        x = xT_ref[...]
        # layer1..layer3: Linear + ReLU.  MXU matmuls with the batch streaming
        # along the (wide) N dimension; bias broadcasts over lanes.
        h = jnp.dot(w1_ref[...], x, preferred_element_type=jnp.float32)
        h = jnp.maximum(h + b1_ref[...], 0.0)
        h = jnp.dot(w2_ref[...], h, preferred_element_type=jnp.float32)
        h = jnp.maximum(h + b2_ref[...], 0.0)
        h = jnp.dot(w3_ref[...], h, preferred_element_type=jnp.float32)
        h = jnp.maximum(h + b3_ref[...], 0.0)
        if reduce_output:
            # output_layer with out_features == 1: VPU multiply + sublane
            # reduce (XLU) instead of a 1-column MXU fill/drain.
            out = jnp.sum(h * w4_ref[...], axis=0, keepdims=True) + b4_ref[...]
        else:
            out = jnp.dot(w4_ref[...], h,
                          preferred_element_type=jnp.float32) + b4_ref[...]
        o_ref[...] = out.astype(o_ref.dtype)

    return kernel


def critic_forward(x, params, *, batch_tile=512):
    """x: [B, input_size] float32 -> [B, output_size] float32."""
    w1, b1 = params["w1"], params["b1"]
    w2, b2 = params["w2"], params["b2"]
    w3, b3 = params["w3"], params["b3"]
    w4, b4 = params["w4"], params["b4"]

    B, in_size = x.shape
    out_size = w4.shape[0]
    reduce_output = (out_size == 1)
    # (hidden, 1) column for the broadcast-multiply + sublane-reduce path.
    w4_arg = w4.T if reduce_output else w4

    # Layout plumbing only: put batch on the lane axis for lane-dense
    # activations and output stores.
    xT = x.T  # (input_size, B)

    kernel = _make_critic_kernel(reduce_output)
    weight_args = (w1, b1, w2, b2, w3, b3, w4_arg, b4)

    if B <= batch_tile:
        # Small batch: one VMEM-resident block, no grid (grid = serial loop on
        # 1-TC chips; pure added overhead for an overhead-bound kernel).
        out_t = pl.pallas_call(
            kernel,
            out_shape=jax.ShapeDtypeStruct((out_size, B), jnp.float32),
            in_specs=[pl.BlockSpec(xT.shape, lambda: (0, 0))]
                    + [pl.BlockSpec(a.shape, lambda: (0, 0)) for a in weight_args],
            out_specs=pl.BlockSpec((out_size, B), lambda: (0, 0)),
        )(xT, *weight_args)
        return out_t.T

    # Large batch: 1-D parallel grid over lane-aligned batch tiles so v7x's two
    # TensorCores each take half the batch (no-op on 1-TC v5e/v6e).  Tile is a
    # few tens of KiB -> far under the 64 MiB v7x VMEM even double-buffered.
    bt = batch_tile
    B_pad = pl.cdiv(B, bt) * bt
    if B_pad != B:
        xT = jnp.pad(xT, ((0, 0), (0, B_pad - B)))
    out_t = pl.pallas_call(
        kernel,
        out_shape=jax.ShapeDtypeStruct((out_size, B_pad), jnp.float32),
        grid=(B_pad // bt,),
        in_specs=[pl.BlockSpec((in_size, bt), lambda i: (0, i))]
                + [pl.BlockSpec(a.shape, lambda i: (0, 0)) for a in weight_args],
        out_specs=pl.BlockSpec((out_size, bt), lambda i: (0, i)),
        compiler_params=pltpu.CompilerParams(
            dimension_semantics=("parallel",)),
    )(xT, *weight_args)
    return out_t[:, :B].T


def init_critic_params(key, input_size, hidden_size=12, output_size=1):
    """nn.Linear-style init (uniform +/- 1/sqrt(fan_in)).

    Weights are stored in PyTorch layout [out_features, in_features];
    biases as [out_features, 1] columns (feature-major kernel layout)."""
    def linear(k, fan_in, fan_out):
        kw, kb = jax.random.split(k)
        bound = 1.0 / jnp.sqrt(fan_in)
        w = jax.random.uniform(kw, (fan_out, fan_in), jnp.float32, -bound, bound)
        b = jax.random.uniform(kb, (fan_out, 1), jnp.float32, -bound, bound)
        return w, b

    k1, k2, k3, k4 = jax.random.split(key, 4)
    w1, b1 = linear(k1, input_size, hidden_size)
    w2, b2 = linear(k2, hidden_size, hidden_size)
    w3, b3 = linear(k3, hidden_size, hidden_size)
    w4, b4 = linear(k4, hidden_size, output_size)
    return {"w1": w1, "b1": b1, "w2": w2, "b2": b2,
            "w3": w3, "b3": b3, "w4": w4, "b4": b4}


def critic_reference(x, p):
    h = jnp.maximum(x @ p["w1"].T + p["b1"].T, 0.0)
    h = jnp.maximum(h @ p["w2"].T + p["b2"].T, 0.0)
    h = jnp.maximum(h @ p["w3"].T + p["b3"].T, 0.0)
    return h @ p["w4"].T + p["b4"].T


if __name__ == "__main__":
    key = jax.random.PRNGKey(0)
    k_params, k_x1, k_x2 = jax.random.split(key, 3)

    input_size, hidden_size, output_size = 16, 12, 1
    params = init_critic_params(k_params, input_size, hidden_size, output_size)

    # 1) Small batch: single-block (no grid) fast path.
    x_small = jax.random.normal(k_x1, (8, input_size), jnp.float32)
    out_small = jax.block_until_ready(critic_forward(x_small, params))
    ref_small = critic_reference(x_small, params)
    assert out_small.shape == (8, output_size), out_small.shape
    assert jnp.allclose(out_small, ref_small, atol=1e-5, rtol=1e-5), \
        "small-batch mismatch vs reference"

    # 2) Larger batch: exercises the 1-D parallel batch grid + padding path.
    x_big = jax.random.normal(k_x2, (300, input_size), jnp.float32)
    out_big = jax.block_until_ready(critic_forward(x_big, params, batch_tile=256))
    ref_big = critic_reference(x_big, params)
    assert out_big.shape == (300, output_size), out_big.shape
    assert jnp.allclose(out_big, ref_big, atol=1e-5, rtol=1e-5), \
        "large-batch mismatch vs reference"

    print("KERNEL_OK")
</pallas_src>

<mosaic_0001>
module attributes {stable_mosaic.version = 11 : i64} {
  func.func @kernel(%arg0: memref<16x8xf32, #tpu.memory_space<vmem>>, %arg1: memref<12x16xf32, #tpu.memory_space<vmem>>, %arg2: memref<12x1xf32, #tpu.memory_space<vmem>>, %arg3: memref<12x12xf32, #tpu.memory_space<vmem>>, %arg4: memref<12x1xf32, #tpu.memory_space<vmem>>, %arg5: memref<12x12xf32, #tpu.memory_space<vmem>>, %arg6: memref<12x1xf32, #tpu.memory_space<vmem>>, %arg7: memref<12x1xf32, #tpu.memory_space<vmem>>, %arg8: memref<1x1xf32, #tpu.memory_space<vmem>>, %arg9: memref<1x8xf32, #tpu.memory_space<vmem>>) attributes {dimension_semantics = [], scalar_prefetch = 0 : i64, scratch_operands = 0 : i64, tpu.core_type = #tpu.core_type<tc>} {
    %c0 = arith.constant 0 : index
    %c0_0 = arith.constant 0 : index
    %0 = vector.load %arg0[%c0, %c0_0] : memref<16x8xf32, #tpu.memory_space<vmem>>, vector<16x8xf32>
    %c0_1 = arith.constant 0 : index
    %c0_2 = arith.constant 0 : index
    %1 = vector.load %arg1[%c0_1, %c0_2] : memref<12x16xf32, #tpu.memory_space<vmem>>, vector<12x16xf32>
    %cst = arith.constant dense<0.000000e+00> : vector<12x8xf32>
    %2 = tpu.matmul %1, %0, %cst {dimension_numbers = #tpu.dot_dimension_numbers<[1], [0], [0], [1], [0, 0, 1, 1], [], []>} : vector<12x16xf32>, vector<16x8xf32>, vector<12x8xf32> -> vector<12x8xf32>
    %c0_3 = arith.constant 0 : index
    %c0_4 = arith.constant 0 : index
    %3 = vector.load %arg2[%c0_3, %c0_4] : memref<12x1xf32, #tpu.memory_space<vmem>>, vector<12x1xf32>
    %4 = vector.broadcast %3 : vector<12x1xf32> to vector<12x8xf32>
    %5 = arith.addf %2, %4 : vector<12x8xf32>
    %cst_5 = arith.constant 0.000000e+00 : f32
    %6 = vector.broadcast %cst_5 : f32 to vector<12x8xf32>
    %7 = arith.maximumf %5, %6 : vector<12x8xf32>
    %c0_6 = arith.constant 0 : index
    %c0_7 = arith.constant 0 : index
    %8 = vector.load %arg3[%c0_6, %c0_7] : memref<12x12xf32, #tpu.memory_space<vmem>>, vector<12x12xf32>
    %cst_8 = arith.constant dense<0.000000e+00> : vector<12x8xf32>
    %9 = tpu.matmul %8, %7, %cst_8 {dimension_numbers = #tpu.dot_dimension_numbers<[1], [0], [0], [1], [0, 0, 1, 1], [], []>} : vector<12x12xf32>, vector<12x8xf32>, vector<12x8xf32> -> vector<12x8xf32>
    %c0_9 = arith.constant 0 : index
    %c0_10 = arith.constant 0 : index
    %10 = vector.load %arg4[%c0_9, %c0_10] : memref<12x1xf32, #tpu.memory_space<vmem>>, vector<12x1xf32>
    %11 = vector.broadcast %10 : vector<12x1xf32> to vector<12x8xf32>
    %12 = arith.addf %9, %11 : vector<12x8xf32>
    %cst_11 = arith.constant 0.000000e+00 : f32
    %13 = vector.broadcast %cst_11 : f32 to vector<12x8xf32>
    %14 = arith.maximumf %12, %13 : vector<12x8xf32>
    %c0_12 = arith.constant 0 : index
    %c0_13 = arith.constant 0 : index
    %15 = vector.load %arg5[%c0_12, %c0_13] : memref<12x12xf32, #tpu.memory_space<vmem>>, vector<12x12xf32>
    %cst_14 = arith.constant dense<0.000000e+00> : vector<12x8xf32>
    %16 = tpu.matmul %15, %14, %cst_14 {dimension_numbers = #tpu.dot_dimension_numbers<[1], [0], [0], [1], [0, 0, 1, 1], [], []>} : vector<12x12xf32>, vector<12x8xf32>, vector<12x8xf32> -> vector<12x8xf32>
    %c0_15 = arith.constant 0 : index
    %c0_16 = arith.constant 0 : index
    %17 = vector.load %arg6[%c0_15, %c0_16] : memref<12x1xf32, #tpu.memory_space<vmem>>, vector<12x1xf32>
    %18 = vector.broadcast %17 : vector<12x1xf32> to vector<12x8xf32>
    %19 = arith.addf %16, %18 : vector<12x8xf32>
    %cst_17 = arith.constant 0.000000e+00 : f32
    %20 = vector.broadcast %cst_17 : f32 to vector<12x8xf32>
    %21 = arith.maximumf %19, %20 : vector<12x8xf32>
    %c0_18 = arith.constant 0 : index
    %c0_19 = arith.constant 0 : index
    %22 = vector.load %arg7[%c0_18, %c0_19] : memref<12x1xf32, #tpu.memory_space<vmem>>, vector<12x1xf32>
    %23 = vector.broadcast %22 : vector<12x1xf32> to vector<12x8xf32>
    %24 = arith.mulf %21, %23 : vector<12x8xf32>
    %cst_20 = arith.constant dense<0.000000e+00> : vector<8xf32>
    %25 = vector.multi_reduction <add>, %24, %cst_20 [0] : vector<12x8xf32> to vector<8xf32>
    %26 = vector.shape_cast %25 : vector<8xf32> to vector<1x8xf32>
    %c0_21 = arith.constant 0 : index
    %c0_22 = arith.constant 0 : index
    %27 = vector.load %arg8[%c0_21, %c0_22] : memref<1x1xf32, #tpu.memory_space<vmem>>, vector<1x1xf32>
    %28 = vector.broadcast %27 : vector<1x1xf32> to vector<1x8xf32>
    %29 = arith.addf %26, %28 : vector<1x8xf32>
    %c0_23 = arith.constant 0 : index
    %c0_24 = arith.constant 0 : index
    %30 = vector.load %arg9[%c0_23, %c0_24] : memref<1x8xf32, #tpu.memory_space<vmem>>, vector<1x8xf32>
    tpu.vector_store %arg9[%c0_23, %c0_24], %29 {strides = array<i32>} : memref<1x8xf32, #tpu.memory_space<vmem>>, vector<1x8xf32>,
    return
  }
}

</mosaic_0001>

<llo_original>
// kernel: tpu_custom_call.1
$region0: #{tpu_custom_call.1}
  #allocation0 [shape = 'u32[]', space=smem, size = 0x4, offset = 0x4, fixed_abs, tag = 'smem constant byte address 0x4 - core index']
  #allocation1 [shape = 'u32[72,128]{1,0:T(1,128)}', space=vmem, size = 0x9000, scoped, tag = 'internal scratch']
  #allocation2 [shape = 'f32[1,1]{1,0:T(1,128)S(1)}', space=vmem, size = 0x200, scoped, tag = 'scoped memory for tpu_custom_call.1']
  %s0 = inlined_call_operand.vmem [shape: f32[16,8], index: 0, kind: input, shape index: {}]
  %s1 = inlined_call_operand.vmem [shape: f32[12,16], index: 1, kind: input, shape index: {}]
  %s2 = inlined_call_operand.vmem [shape: f32[12,1], index: 2, kind: input, shape index: {}]
  %s3 = inlined_call_operand.vmem [shape: f32[12,12], index: 3, kind: input, shape index: {}]
  %s4 = inlined_call_operand.vmem [shape: f32[12,1], index: 4, kind: input, shape index: {}]
  %s5 = inlined_call_operand.vmem [shape: f32[12,12], index: 5, kind: input, shape index: {}]
  %s6 = inlined_call_operand.vmem [shape: f32[12,1], index: 6, kind: input, shape index: {}]
  %s7 = inlined_call_operand.vmem [shape: f32[12,1], index: 7, kind: input, shape index: {}]
  %s8 = inlined_call_operand.<no memory space> [shape: f32[1,1], index: 8, kind: input, shape index: {}]
  %s9 = inlined_call_operand.hbm [shape: f32[1,8], index: 9, kind: output, shape index: {}]
  %s10 = sld [smem:[#allocation0]]
  $region46: #{tpu_custom_call.1} parent=0
    _
  %s12 = ssub.s32 1, %s10
  %s13 = scalar_select 0, %s12, %s10
  %v14 = vstv %s8
  %15 = vst [vmem:[#allocation2] sm:$0x1] %v14
  $region1: #{tpu_custom_call.1} parent=0
    #allocation3 [shape = 'u8[512]{0}', space=vmem, size = 0x400, scoped, tag = 'output window, operand 0, single buffered']
    #allocation4 [shape = 's32[1]{0}', space=sflag, size = 0x4, scoped, tag = 'scoped memory for tpu_custom_call.1']
    %16 = vsyncpa [#allocation4], 0
    // Predicated region
    $region2: #{tpu_custom_call.1} parent=1 // pred_check
      _
    $region3: #{tpu_custom_call.1} parent=1 // pred_check_branch
      %18 = sbr.rel (0) target = $region5
    $region4: #{tpu_custom_call.1} parent=1 // pred_region
      _
    $region5: #{tpu_custom_call.1} parent=1 // pred_fallthru
      _
    // Predicated region
    $region6: #{tpu_custom_call.1} parent=1 // pred_check
      _
    $region7: #{tpu_custom_call.1} parent=1 // pred_check_branch
      %20 = sbr.rel (0) target = $region9
    $region8: #{tpu_custom_call.1} parent=1 // pred_region
      _
    $region9: #{tpu_custom_call.1} parent=1 // pred_fallthru
      _
    // Predicated region
    $region10: #{tpu_custom_call.1} parent=1 // pred_check
      _
    $region11: #{tpu_custom_call.1} parent=1 // pred_check_branch
      %22 = sbr.rel (0) target = $region13
    $region12: #{tpu_custom_call.1} parent=1 // pred_region
      _
    $region13: #{tpu_custom_call.1} parent=1 // pred_fallthru
      _
    // Predicated region
    $region14: #{tpu_custom_call.1} parent=1 // pred_check
      _
    $region15: #{tpu_custom_call.1} parent=1 // pred_check_branch
      %24 = sbr.rel (0) target = $region17
    $region16: #{tpu_custom_call.1} parent=1 // pred_region
      _
    $region17: #{tpu_custom_call.1} parent=1 // pred_fallthru
      _
    // Predicated region
    $region18: #{tpu_custom_call.1} parent=1 // pred_check
      _
    $region19: #{tpu_custom_call.1} parent=1 // pred_check_branch
      %26 = sbr.rel (0) target = $region21
    $region20: #{tpu_custom_call.1} parent=1 // pred_region
      _
    $region21: #{tpu_custom_call.1} parent=1 // pred_fallthru
      _
    // Predicated region
    $region22: #{tpu_custom_call.1} parent=1 // pred_check
      _
    $region23: #{tpu_custom_call.1} parent=1 // pred_check_branch
      %28 = sbr.rel (0) target = $region25
    $region24: #{tpu_custom_call.1} parent=1 // pred_region
      _
    $region25: #{tpu_custom_call.1} parent=1 // pred_fallthru
      _
    // Predicated region
    $region26: #{tpu_custom_call.1} parent=1 // pred_check
      _
    $region27: #{tpu_custom_call.1} parent=1 // pred_check_branch
      %30 = sbr.rel (0) target = $region29
    $region28: #{tpu_custom_call.1} parent=1 // pred_region
      _
    $region29: #{tpu_custom_call.1} parent=1 // pred_fallthru
      _
    // Predicated region
    $region30: #{tpu_custom_call.1} parent=1 // pred_check
      _
    $region31: #{tpu_custom_call.1} parent=1 // pred_check_branch
      %32 = sbr.rel (0) target = $region33
    $region32: #{tpu_custom_call.1} parent=1 // pred_region
      _
    $region33: #{tpu_custom_call.1} parent=1 // pred_fallthru
      _
    // Predicated region
    $region34: #{tpu_custom_call.1} parent=1 // pred_check
      _
    $region35: #{tpu_custom_call.1} parent=1 // pred_check_branch
      %34 = sbr.rel (0) target = $region37
    $region36: #{tpu_custom_call.1} parent=1 // pred_region
      _
    $region37: #{tpu_custom_call.1} parent=1 // pred_fallthru
      _
    %v35 = vld [vmem:[%s0] sm:$0xff]
    %v36 = vld [vmem:[%s0 + $0x8] sm:$0xff]
    %v37 = vld [vmem:[%s1] sm:$0xff]
    %v38 = vld [vmem:[%s1 + $0x8] sm:$0xf]
    %v39 = vld [vmem:[%s2] sm:$0xff]
    %v40 = vld [vmem:[%s2 + $0x8] sm:$0xf]
    %42 = vset.pattern.permute.xlu0 0
    %43 = vperm.xlu0 %42, %v39
    %v44 = vpop.permute.xlu0 %43
    %47 = vset.pattern.permute.xlu0 0
    %48 = vperm.xlu0 %47, %v40
    %v49 = vpop.permute.xlu0 %48
    %vm51 = vcmask 130048
    %v53 = vsel %vm51, %v37, 0
    %v56 = vsel %vm51, %v38, 0
    %58 = vmatpush.msra.mxu0 0.0
    %59 = vmatpush.msra.mxu0 0.0
    %60 = vmatpush.msra.mxu0 0.0
    %61 = vmatpush.msra.mxu0 0.0
    %62 = vmatpush.msra.mxu0 0.0
    %63 = vmatpush.msra.mxu0 0.0
    %64 = vmatpush.msra.mxu0 0.0
    %65 = vmatpush.msra.mxu0 0.0
    %66 = vmatpush.msra.mxu0 0.0
    %67 = vmatpush.msra.mxu0 0.0
    %68 = vmatpush.msra.mxu0 0.0
    %69 = vmatpush.msra.mxu0 0.0
    %70 = vmatpush.msra.mxu0 0.0
    %71 = vmatpush.msra.mxu0 0.0
    %72 = vmatpush.msra.mxu0 %v36
    %73 = vmatpush.msra.mxu0 %v35
    %74 = vmatmul.f32.gmra.mxu0 %v53
    %v75 = vpop.f32.mrf.mxu0
    %v76 = vadd.f32 %v44, %v75
    %77 = vmatmul.f32.gmra.mxu0 %v56
    %v78 = vpop.f32.mrf.mxu0
    %v79 = vadd.f32 %v49, %v78
    %80 = vdwg.mxu0
    %v81 = vmax.f32 %v76, 0.0
    %v82 = vmax.f32 %v79, 0.0
    %v83 = vld [vmem:[%s3] sm:$0xff]
    %v84 = vld [vmem:[%s3 + $0x8] sm:$0xf]
    %v85 = vld [vmem:[%s4] sm:$0xff]
    %v86 = vld [vmem:[%s4 + $0x8] sm:$0xf]
    %88 = vset.pattern.permute.xlu0 0
    %89 = vperm.xlu0 %88, %v85
    %v90 = vpop.permute.xlu0 %89
    %93 = vset.pattern.permute.xlu0 0
    %94 = vperm.xlu0 %93, %v86
    %v95 = vpop.permute.xlu0 %94
    %vm97 = vcmask 97280
    %v99 = vsel %vm97, %v83, 0
    %v102 = vsel %vm97, %v84, 0
    %vm104 = vcmask 1043456
    %v106 = vsel %vm104, %v82, 0
    %108 = vmatpush.msra.mxu0 0.0
    %109 = vmatpush.msra.mxu0 0.0
    %110 = vmatpush.msra.mxu0 0.0
    %111 = vmatpush.msra.mxu0 0.0
    %112 = vmatpush.msra.mxu0 0.0
    %113 = vmatpush.msra.mxu0 0.0
    %114 = vmatpush.msra.mxu0 0.0
    %115 = vmatpush.msra.mxu0 0.0
    %116 = vmatpush.msra.mxu0 0.0
    %117 = vmatpush.msra.mxu0 0.0
    %118 = vmatpush.msra.mxu0 0.0
    %119 = vmatpush.msra.mxu0 0.0
    %120 = vmatpush.msra.mxu0 0.0
    %121 = vmatpush.msra.mxu0 0.0
    %122 = vmatpush.msra.mxu0 %v106
    %123 = vmatpush.msra.mxu0 %v81
    %124 = vmatmul.f32.gmra.mxu0 %v99
    %v125 = vpop.f32.mrf.mxu0
    %v126 = vadd.f32 %v90, %v125
    %127 = vmatmul.f32.gmra.mxu0 %v102
    %v128 = vpop.f32.mrf.mxu0
    %v129 = vadd.f32 %v95, %v128
    %130 = vdwg.mxu0
    %v131 = vmax.f32 %v126, 0.0
    %v132 = vmax.f32 %v129, 0.0
    %v133 = vld [vmem:[%s5] sm:$0xff]
    %v134 = vld [vmem:[%s5 + $0x8] sm:$0xf]
    %v135 = vld [vmem:[%s6] sm:$0xff]
    %v136 = vld [vmem:[%s6 + $0x8] sm:$0xf]
    %138 = vset.pattern.permute.xlu0 0
    %139 = vperm.xlu0 %138, %v135
    %v140 = vpop.permute.xlu0 %139
    %143 = vset.pattern.permute.xlu0 0
    %144 = vperm.xlu0 %143, %v136
    %v145 = vpop.permute.xlu0 %144
    %v148 = vsel %vm97, %v133, 0
    %v151 = vsel %vm97, %v134, 0
    %v154 = vsel %vm104, %v132, 0
    %156 = vmatpush.msra.mxu0 0.0
    %157 = vmatpush.msra.mxu0 0.0
    %158 = vmatpush.msra.mxu0 0.0
    %159 = vmatpush.msra.mxu0 0.0
    %160 = vmatpush.msra.mxu0 0.0
    %161 = vmatpush.msra.mxu0 0.0
    %162 = vmatpush.msra.mxu0 0.0
    %163 = vmatpush.msra.mxu0 0.0
    %164 = vmatpush.msra.mxu0 0.0
    %165 = vmatpush.msra.mxu0 0.0
    %166 = vmatpush.msra.mxu0 0.0
    %167 = vmatpush.msra.mxu0 0.0
    %168 = vmatpush.msra.mxu0 0.0
    %169 = vmatpush.msra.mxu0 0.0
    %170 = vmatpush.msra.mxu0 %v154
    %171 = vmatpush.msra.mxu0 %v131
    %172 = vmatmul.f32.gmra.mxu0 %v148
    %v173 = vpop.f32.mrf.mxu0
    %v174 = vadd.f32 %v140, %v173
    %175 = vmatmul.f32.gmra.mxu0 %v151
    %v176 = vpop.f32.mrf.mxu0
    %v177 = vadd.f32 %v145, %v176
    %178 = vdwg.mxu0
    %v179 = vmax.f32 %v174, 0.0
    %v180 = vmax.f32 %v177, 0.0
    %v181 = vld [vmem:[%s7] sm:$0xff]
    %v182 = vld [vmem:[%s7 + $0x8] sm:$0xf]
    %184 = vset.pattern.permute.xlu0 0
    %185 = vperm.xlu0 %184, %v181
    %v186 = vpop.permute.xlu0 %185
    %189 = vset.pattern.permute.xlu0 0
    %190 = vperm.xlu0 %189, %v182
    %v191 = vpop.permute.xlu0 %190
    %v193 = vmul.f32 %v179, %v186
    %v194 = vmul.f32 %v180, %v191
    %vm195 = vcmask 64512
    %v196 = vsel %vm195, %v193, 0.0
    %vm197 = vcmask 60416
    %v198 = vsel %vm197, %v194, 0.0
    %v199 = vadd.f32 %v196, %v198
    %v200 = vrot.slane %v199, 4
    %v201 = vadd.f32 %v199, %v200
    %v202 = vrot.slane %v201, 2
    %v203 = vadd.f32 %v201, %v202
    %v204 = vrot.slane %v203, 1
    %v205 = vadd.f32 %v203, %v204
    %v206 = vld [vmem:[#allocation2] sm:$0x1]
    %208 = vset.pattern.permute.xlu0 0
    %209 = vperm.xlu0 %208, %v206
    %v210 = vpop.permute.xlu0 %209
    %v212 = vperm.slane %v210, 0
    %v213 = vadd.f32 %v205, %v212
    %vm214 = vcmask 57344
    %215 = vst.msk [vmem:[#allocation3] sm:$0x1] %vm214, %v213
    // Predicated region
    $region38: #{tpu_custom_call.1} parent=1 // pred_check
      _
    $region39: #{tpu_custom_call.1} parent=1 // pred_check_branch
      %217 = sbr.rel (0) target = $region41
    $region40: #{tpu_custom_call.1} parent=1 // pred_region
      %219 = vsyncadd [#allocation4], 0
      %s221 = sshll.u32 [#allocation3], 4
      %s222 = int_to_ptr.vmem [resolvable:$true] %s221
      %s223 = sshll.u32 %s9, 4
      %s224 = int_to_ptr.hbm [resolvable:$true] %s223
      %226 = dma.vmem_to_hbm [thread:$0]  %s222, 16, %s224, [#allocation4]
    $region41: #{tpu_custom_call.1} parent=1 // pred_fallthru
      _
    // Predicated region
    $region42: #{tpu_custom_call.1} parent=1 // pred_check
      _
    $region43: #{tpu_custom_call.1} parent=1 // pred_check_branch
      %228 = sbr.rel (0) target = $region45
    $region44: #{tpu_custom_call.1} parent=1 // pred_region
      %230 = dma.done [#allocation4], 16
    $region45: #{tpu_custom_call.1} parent=1 // pred_fallthru
      _
    %231 = vsyncpa [#allocation4], 1

</llo_original>
